<compile_context>
chip_gen: v5e
topology: v5e:2x2
jax: 0.10.0
libtpu: 0.0.40
codegen_flags: <defaults>
</compile_context>

<pallas_src>
import functools

import jax
import jax.numpy as jnp
from jax import lax
from jax.experimental import pallas as pl
from jax.experimental.pallas import tpu as pltpu

LN_EPS = 1e-5


def add_norm_kernel(*refs, trainable_add):
    """out = LayerNorm(x + y * sigmoid(mask) * 2)  (or LayerNorm(x + y))."""
    if trainable_add:
        mask_ref, w_ref, b_ref, x_ref, y_ref, o_ref = refs
    else:
        w_ref, b_ref, x_ref, y_ref, o_ref = refs

    x = x_ref[...].astype(jnp.float32)
    y = y_ref[...].astype(jnp.float32)
    if trainable_add:
        gate = jax.nn.sigmoid(mask_ref[...]) * 2.0  # (1, D) f32, EUP path
        z = x + y * gate
    else:
        z = x + y

    inv_d = 1.0 / z.shape[-1]
    # Two-pass (centered) statistics in f32.  The second reduce is VPU/XLU
    # work, which has plenty of slack in this HBM-bound kernel, and it is more
    # numerically robust than the one-pass E[x^2]-E[x]^2 form.
    mean = jnp.sum(z, axis=-1, keepdims=True) * inv_d
    centered = z - mean
    var = jnp.sum(centered * centered, axis=-1, keepdims=True) * inv_d

    normed = centered * lax.rsqrt(var + LN_EPS)  # rsqrt -> EUP slot
    out = normed * w_ref[...] + b_ref[...]
    o_ref[...] = out.astype(o_ref.dtype)


def _vmem_budget_and_cap():
    """Generation-aware (budget_bytes, scoped_limit_ceiling_bytes)."""
    cap = None
    try:
        cap = getattr(pltpu.get_tpu_info(), "vmem_capacity_bytes", None)
    except Exception:  # info unavailable -> fall through to conservative default
        cap = None
    if not cap or cap <= 0:
        cap = 64 << 20  # conservative: v7x per-TensorCore VMEM
    if cap >= (128 << 20):
        # v5e / v6e (128 MiB VMEM): large tiles to stay at HBM roofline.
        return 88 << 20, 100 << 20
    # 64 MiB class (v7x): ~45% budget, keep real headroom for the pipeline.
    return int(cap * 0.45), int(cap * 0.75)


def _pick_row_tile(rows, d, itemsize, vmem_budget_bytes):
    """Largest sublane-aligned row tile whose pipelined footprint fits budget."""
    # Per row of a tile:
    #   double-buffered I/O streams: 2 bufs * (x + y + out) * d * itemsize
    #   live f32 temporaries (z, centered, squares, out_f32, broadcasts): ~24 B/elem
    per_row = 6 * d * itemsize + 24 * d
    tile = vmem_budget_bytes // per_row
    # Byte-driven cap instead of a fixed 2048 rows: allow up to 8192 rows when
    # D is small so each grid step streams several MiB and the ~0.35 us
    # per-step pipeline overhead stays <5% of step time.
    tile = min(int(tile), 8192, max(rows, 8))
    # Keep >= 2 grid steps so v7x's two TensorCores both get work via the
    # "parallel" grid axis.  Harmless on 1-TC chips: it only bites when the
    # whole input would fit a single tile, i.e. when the input is small.
    if rows >= 16:
        tile = min(tile, max(8, (pl.cdiv(rows, 2) // 8) * 8))
    tile = max(8, (tile // 8) * 8)  # sublane-aligned
    return tile, per_row


def add_norm(x, y, mask, weight, bias, *, trainable_add=True, row_tile=None):
    """AddNorm forward. x, y: (..., D); mask/weight/bias: (D,)."""
    assert x.shape == y.shape
    orig_shape = x.shape
    d = orig_shape[-1]
    rows = 1
    for s in orig_shape[:-1]:
        rows *= s

    x2 = x.reshape(rows, d)
    y2 = y.reshape(rows, d)
    w2 = weight.reshape(1, d).astype(jnp.float32)
    b2 = bias.reshape(1, d).astype(jnp.float32)

    itemsize = jnp.dtype(x.dtype).itemsize
    vmem_budget, vmem_cap = _vmem_budget_and_cap()
    auto_tile, per_row = _pick_row_tile(rows, d, itemsize, vmem_budget)
    if row_tile is None:
        row_tile = auto_tile
    row_tile = max(8, min(row_tile, max(rows, 8)))
    row_tile = (row_tile // 8) * 8 or 8

    # Ragged grid: no wrapper-side jnp.pad (that would cost an extra full HBM
    # read+write of both inputs).  Pallas masks the trailing block's
    # out-of-bounds writeback; LayerNorm is row-wise, so undefined data read
    # into padded rows stays confined to rows that are never written back.
    num_tiles = pl.cdiv(rows, row_tile)

    # Scoped-VMEM limit sized to the chosen tile (+ headroom for params and
    # pipeline bookkeeping), clamped to a generation-appropriate ceiling.
    vmem_limit = per_row * row_tile + (4 << 20)
    vmem_limit = int(max(16 << 20, min(vmem_cap, vmem_limit)))

    kernel = functools.partial(add_norm_kernel, trainable_add=trainable_add)

    param_spec = pl.BlockSpec((1, d), lambda i: (0, 0))         # resident params
    data_spec = pl.BlockSpec((row_tile, d), lambda i: (i, 0))   # row-tiled streams

    in_specs = [param_spec, param_spec, data_spec, data_spec]
    args = [w2, b2, x2, y2]
    if trainable_add:
        # Only ship the gating mask (and its VMEM buffer/DMA) when it is used.
        in_specs = [param_spec] + in_specs
        args = [mask.reshape(1, d).astype(jnp.float32)] + args

    # NOTE: for the lane-dense fast path (unmasked vst) D should be a multiple
    # of 128; production transformer hidden sizes typically are.  For D < 128
    # (like the D=32 smoke test below) the full-extent last dim is legal but
    # stores are masked partial vregs.
    # TODO(synk): for small D, pack k=128//D rows per lane row and use
    # segmented (block-diagonal matmul) reductions to recover lane-dense I/O.
    out2 = pl.pallas_call(
        kernel,
        out_shape=jax.ShapeDtypeStruct((rows, d), x.dtype),
        grid_spec=pltpu.PrefetchScalarGridSpec(
            num_scalar_prefetch=0,
            grid=(num_tiles,),
            in_specs=in_specs,
            out_specs=data_spec,
        ),
        compiler_params=pltpu.CompilerParams(
            dimension_semantics=("parallel",),
            vmem_limit_bytes=vmem_limit,
        ),
    )(*args)

    return out2.reshape(orig_shape)


def _reference(x, y, mask, weight, bias, *, trainable_add=True):
    xf = x.astype(jnp.float32)
    yf = y.astype(jnp.float32)
    if trainable_add:
        z = xf + yf * jax.nn.sigmoid(mask.astype(jnp.float32)) * 2.0
    else:
        z = xf + yf
    mu = z.mean(-1, keepdims=True)
    var = ((z - mu) ** 2).mean(-1, keepdims=True)
    return ((z - mu) / jnp.sqrt(var + LN_EPS) * weight + bias).astype(x.dtype)


if __name__ == "__main__":
    batch, seq, hidden = 2, 8, 32

    key = jax.random.PRNGKey(0)
    kx, ky = jax.random.split(key)
    x = jax.random.normal(kx, (batch, seq, hidden), dtype=jnp.float32)
    y = jax.random.normal(ky, (batch, seq, hidden), dtype=jnp.float32)

    # Deterministic parameter init matching PyTorch AddNorm.__init__:
    #   mask = zeros(input_size) (trainable_add=True); LayerNorm: w=1, b=0.
    mask = jnp.zeros((hidden,), dtype=jnp.float32)
    weight = jnp.ones((hidden,), dtype=jnp.float32)
    bias = jnp.zeros((hidden,), dtype=jnp.float32)

    out = add_norm(x, y, mask, weight, bias, trainable_add=True)
    out = jax.block_until_ready(out)
    ref = _reference(x, y, mask, weight, bias, trainable_add=True)
    assert out.shape == (batch, seq, hidden)
    assert jnp.allclose(out, ref, atol=1e-5, rtol=1e-5)

    # Exercise the ragged-grid path (rows=15 not divisible by the 8-row tile)
    # and the trainable_add=False (no mask argument) path.
    x3 = jax.random.normal(kx, (3, 5, hidden), dtype=jnp.float32)
    y3 = jax.random.normal(ky, (3, 5, hidden), dtype=jnp.float32)
    out3 = jax.block_until_ready(
        add_norm(x3, y3, mask, weight, bias, trainable_add=False)
    )
    ref3 = _reference(x3, y3, mask, weight, bias, trainable_add=False)
    assert out3.shape == (3, 5, hidden)
    assert jnp.allclose(out3, ref3, atol=1e-5, rtol=1e-5)

    print("KERNEL_OK")
</pallas_src>

<mosaic_0001>
module attributes {stable_mosaic.version = 11 : i64} {
  func.func @add_norm_kernel(%arg0: i32, %arg1: memref<1x32xf32, #tpu.memory_space<vmem>>, %arg2: memref<1x32xf32, #tpu.memory_space<vmem>>, %arg3: memref<1x32xf32, #tpu.memory_space<vmem>>, %arg4: memref<8x32xf32, #tpu.memory_space<vmem>>, %arg5: memref<8x32xf32, #tpu.memory_space<vmem>>, %arg6: memref<8x32xf32, #tpu.memory_space<vmem>>) attributes {dimension_semantics = [#tpu.dimension_semantics<parallel>], iteration_bounds = array<i64: 2>, scalar_prefetch = 0 : i64, scratch_operands = 0 : i64, tpu.core_type = #tpu.core_type<tc>, window_params = [{pipeline_mode = #tpu.pipeline_mode<synchronous>, transform_indices = @transform_0, window_bounds = array<i64: 1, 32>}, {pipeline_mode = #tpu.pipeline_mode<synchronous>, transform_indices = @transform_1, window_bounds = array<i64: 1, 32>}, {pipeline_mode = #tpu.pipeline_mode<synchronous>, transform_indices = @transform_2, window_bounds = array<i64: 1, 32>}, {transform_indices = @transform_3, window_bounds = array<i64: 8, 32>}, {transform_indices = @transform_4, window_bounds = array<i64: 8, 32>}, {transform_indices = @transform_5, window_bounds = array<i64: 8, 32>}]} {
    %c0 = arith.constant 0 : index
    %c0_0 = arith.constant 0 : index
    %0 = vector.load %arg4[%c0, %c0_0] : memref<8x32xf32, #tpu.memory_space<vmem>>, vector<8x32xf32>
    %c0_1 = arith.constant 0 : index
    %c0_2 = arith.constant 0 : index
    %1 = vector.load %arg5[%c0_1, %c0_2] : memref<8x32xf32, #tpu.memory_space<vmem>>, vector<8x32xf32>
    %c0_3 = arith.constant 0 : index
    %c0_4 = arith.constant 0 : index
    %2 = vector.load %arg1[%c0_3, %c0_4] : memref<1x32xf32, #tpu.memory_space<vmem>>, vector<1x32xf32>
    %3 = arith.negf %2 : vector<1x32xf32>
    %4 = math.exp %3 : vector<1x32xf32>
    %cst = arith.constant 1.000000e+00 : f32
    %5 = vector.broadcast %cst : f32 to vector<1x32xf32>
    %6 = arith.addf %5, %4 : vector<1x32xf32>
    %7 = arith.divf %5, %6 : vector<1x32xf32>
    %cst_5 = arith.constant 2.000000e+00 : f32
    %8 = vector.broadcast %cst_5 : f32 to vector<1x32xf32>
    %9 = arith.mulf %7, %8 : vector<1x32xf32>
    %10 = vector.broadcast %9 : vector<1x32xf32> to vector<8x32xf32>
    %11 = arith.mulf %1, %10 : vector<8x32xf32>
    %12 = arith.addf %0, %11 : vector<8x32xf32>
    %cst_6 = arith.constant dense<0.000000e+00> : vector<8xf32>
    %13 = vector.multi_reduction <add>, %12, %cst_6 [1] : vector<8x32xf32> to vector<8xf32>
    %14 = vector.shape_cast %13 : vector<8xf32> to vector<8x1xf32>
    %cst_7 = arith.constant 3.125000e-02 : f32
    %15 = vector.broadcast %cst_7 : f32 to vector<8x1xf32>
    %16 = arith.mulf %14, %15 : vector<8x1xf32>
    %17 = vector.broadcast %16 : vector<8x1xf32> to vector<8x32xf32>
    %18 = arith.subf %12, %17 : vector<8x32xf32>
    %19 = arith.mulf %18, %18 : vector<8x32xf32>
    %cst_8 = arith.constant dense<0.000000e+00> : vector<8xf32>
    %20 = vector.multi_reduction <add>, %19, %cst_8 [1] : vector<8x32xf32> to vector<8xf32>
    %21 = vector.shape_cast %20 : vector<8xf32> to vector<8x1xf32>
    %cst_9 = arith.constant 3.125000e-02 : f32
    %22 = vector.broadcast %cst_9 : f32 to vector<8x1xf32>
    %23 = arith.mulf %21, %22 : vector<8x1xf32>
    %cst_10 = arith.constant 9.99999974E-6 : f32
    %24 = vector.broadcast %cst_10 : f32 to vector<8x1xf32>
    %25 = arith.addf %23, %24 : vector<8x1xf32>
    %26 = math.rsqrt %25 : vector<8x1xf32>
    %27 = vector.broadcast %26 : vector<8x1xf32> to vector<8x32xf32>
    %28 = arith.mulf %18, %27 : vector<8x32xf32>
    %c0_11 = arith.constant 0 : index
    %c0_12 = arith.constant 0 : index
    %29 = vector.load %arg2[%c0_11, %c0_12] : memref<1x32xf32, #tpu.memory_space<vmem>>, vector<1x32xf32>
    %30 = vector.broadcast %29 : vector<1x32xf32> to vector<8x32xf32>
    %31 = arith.mulf %28, %30 : vector<8x32xf32>
    %c0_13 = arith.constant 0 : index
    %c0_14 = arith.constant 0 : index
    %32 = vector.load %arg3[%c0_13, %c0_14] : memref<1x32xf32, #tpu.memory_space<vmem>>, vector<1x32xf32>
    %33 = vector.broadcast %32 : vector<1x32xf32> to vector<8x32xf32>
    %34 = arith.addf %31, %33 : vector<8x32xf32>
    %c0_15 = arith.constant 0 : index
    %c0_16 = arith.constant 0 : index
    %35 = vector.load %arg6[%c0_15, %c0_16] : memref<8x32xf32, #tpu.memory_space<vmem>>, vector<8x32xf32>
    tpu.vector_store %arg6[%c0_15, %c0_16], %34 {strides = array<i32>} : memref<8x32xf32, #tpu.memory_space<vmem>>, vector<8x32xf32>,
    return
  }
  func.func @transform_0(%arg0: i32) -> (i32, i32) {
    %c0_i32 = arith.constant 0 : i32
    %c0_i32_0 = arith.constant 0 : i32
    %c0_i32_1 = arith.constant 0 : i32
    return %c0_i32, %c0_i32_0 : i32, i32
  }
  func.func @transform_1(%arg0: i32) -> (i32, i32) {
    %c0_i32 = arith.constant 0 : i32
    %c0_i32_0 = arith.constant 0 : i32
    %c0_i32_1 = arith.constant 0 : i32
    return %c0_i32, %c0_i32_0 : i32, i32
  }
  func.func @transform_2(%arg0: i32) -> (i32, i32) {
    %c0_i32 = arith.constant 0 : i32
    %c0_i32_0 = arith.constant 0 : i32
    %c0_i32_1 = arith.constant 0 : i32
    return %c0_i32, %c0_i32_0 : i32, i32
  }
  func.func @transform_3(%arg0: i32) -> (i32, i32) {
    %c0_i32 = arith.constant 0 : i32
    %c0_i32_0 = arith.constant 0 : i32
    return %arg0, %c0_i32 : i32, i32
  }
  func.func @transform_4(%arg0: i32) -> (i32, i32) {
    %c0_i32 = arith.constant 0 : i32
    %c0_i32_0 = arith.constant 0 : i32
    return %arg0, %c0_i32 : i32, i32
  }
  func.func @transform_5(%arg0: i32) -> (i32, i32) {
    %c0_i32 = arith.constant 0 : i32
    %c0_i32_0 = arith.constant 0 : i32
    return %arg0, %c0_i32 : i32, i32
  }
}

</mosaic_0001>

<llo_original>
// kernel: tpu_custom_call.1
$region0: #{tpu_custom_call.1}
  #allocation0 [shape = 'u32[]', space=smem, size = 0x4, offset = 0x4, fixed_abs, tag = 'smem constant byte address 0x4 - core index']
  #allocation1 [shape = 'u32[72,128]{1,0:T(1,128)}', space=vmem, size = 0x9000, scoped, tag = 'internal scratch']
  %s0 = inlined_call_operand.hbm [shape: f32[1,32], index: 0, kind: input, shape index: {}]
  %s1 = inlined_call_operand.hbm [shape: f32[1,32], index: 1, kind: input, shape index: {}]
  %s2 = inlined_call_operand.vmem [shape: f32[1,32], index: 2, kind: input, shape index: {}]
  %s3 = inlined_call_operand.hbm [shape: f32[16,32], index: 3, kind: input, shape index: {}]
  %s4 = inlined_call_operand.hbm [shape: f32[16,32], index: 4, kind: input, shape index: {}]
  %s5 = inlined_call_operand.hbm [shape: f32[16,32], index: 5, kind: output, shape index: {}]
  %s6 = sld [smem:[#allocation0]]
  $region69: #{tpu_custom_call.1} parent=0
    _
  %s8 = ssub.s32 1, %s6
  %s9 = scalar_select 0, %s8, %s6
  $region1: #{tpu_custom_call.1} parent=0
    #allocation2 [shape = 'u8[512]{0}', space=vmem, size = 0x400, scoped, tag = 'input window, operand 0, single buffered']
    #allocation3 [shape = 's32[2]{0}', space=sflag, size = 0x8, scoped, tag = 'scoped memory for tpu_custom_call.1']
    #allocation4 [shape = 's32[2]{0}', space=sflag, size = 0x8, scoped, tag = 'scoped memory for tpu_custom_call.1']
    #allocation5 [shape = 'u8[512]{0}', space=vmem, size = 0x400, scoped, tag = 'input window, operand 1, single buffered']
    #allocation6 [shape = 's32[1]{0}', space=sflag, size = 0x4, scoped, tag = 'scoped memory for tpu_custom_call.1']
    #allocation7 [shape = 'u8[8192]{0}', space=vmem, size = 0x2000, scoped, tag = 'input window, operand 3']
    #allocation8 [shape = 'u8[8192]{0}', space=vmem, size = 0x2000, scoped, tag = 'input window, operand 4']
    #allocation9 [shape = 'u8[8192]{0}', space=vmem, size = 0x2000, scoped, tag = 'output window, operand 0']
    %10 = vsyncpa [#allocation3], 0
    %11 = vsyncpa [#allocation6], 0
    %12 = vsyncpa [#allocation4], 0
    %s13 = scalar_lea.sflag [#allocation4], 1
    %14 = vsyncpa %s13, 0
    loop: start=0, step=1, limit=4
    $region2: #{tpu_custom_call.1} parent=1 // loop_pre_header
      _
    $region3: #{tpu_custom_call.1} parent=1 // loop_header
      %s16 = sphi 0, %s20
      %p17 = scmp.ge.s32.totalorder %s16, 4
      %s24 = sphi 0, %s24
      %s26 = sphi 0, %s24
      %s27 = sphi 0, %s26
      %s41 = sphi 0, %s27
      %s45 = sphi 0, %s45
      %s47 = sphi 0, %s45
      %s48 = sphi 0, %s47
      %s62 = sphi 0, %s48
      %s66 = sphi 0, %s66
      %s68 = sphi 0, %s66
      %s69 = sphi 0, %s68
      %s83 = sphi 0, %s69
      %s89 = sphi 0, %s91
      %s92 = sphi 0, %s89
      %s93 = sphi 0, %s92
      %s109 = sphi 0, %s93
      %s115 = sphi 0, %s117
      %s118 = sphi 0, %s115
      %s119 = sphi 0, %s118
      %s135 = sphi 0, %s119
      %s141 = sphi 0, %s143
      %s144 = sphi 0, %s141
      %s145 = sphi 0, %s144
      %s161 = sphi 0, %s145
    $region4: #{tpu_custom_call.1} parent=1 // loop_header_branch
      %19 = sbr.rel (%p17) target = $region8
    $region5: #{tpu_custom_call.1} parent=1 // loop_body
      %s21 = ssub.s32 %s16, 1
      %s22 = ssub.s32 %s16, 2
      %s23 = sadd.s32 %s16, 1
      %s25 = sadd.s32 %s24, 1
      %p28 = scmp.eq.s32.totalorder %s16, 1
      %p29 = scmp.ne.s32.totalorder %s24, %s26
      %p30 = scmp.eq.s32.totalorder %s16, 0
      %p31 = por %p29, %p30
      %p32 = scmp.ne.s32.totalorder %s24, %s26
      %p33 = scmp.eq.s32.totalorder %s21, 1
      %p34 = por %p32, %p33
      %p35 = scmp.ne.s32.totalorder %s26, %s27
      %p36 = scmp.eq.s32.totalorder %s21, 0
      %p37 = por %p35, %p36
      %p38 = scmp.ne.s32.totalorder %s26, %s27
      %p39 = scmp.eq.s32.totalorder %s22, 1
      %p40 = por %p38, %p39
      %p42 = scmp.ne.s32.totalorder %s27, %s41
      %p43 = scmp.eq.s32.totalorder %s22, 0
      %p44 = por %p42, %p43
      %s46 = sadd.s32 %s45, 1
      %p49 = scmp.eq.s32.totalorder %s16, 1
      %p50 = scmp.ne.s32.totalorder %s45, %s47
      %p51 = scmp.eq.s32.totalorder %s16, 0
      %p52 = por %p50, %p51
      %p53 = scmp.ne.s32.totalorder %s45, %s47
      %p54 = scmp.eq.s32.totalorder %s21, 1
      %p55 = por %p53, %p54
      %p56 = scmp.ne.s32.totalorder %s47, %s48
      %p57 = scmp.eq.s32.totalorder %s21, 0
      %p58 = por %p56, %p57
      %p59 = scmp.ne.s32.totalorder %s47, %s48
      %p60 = scmp.eq.s32.totalorder %s22, 1
      %p61 = por %p59, %p60
      %p63 = scmp.ne.s32.totalorder %s48, %s62
      %p64 = scmp.eq.s32.totalorder %s22, 0
      %p65 = por %p63, %p64
      %s67 = sadd.s32 %s66, 1
      %p70 = scmp.eq.s32.totalorder %s16, 1
      %p71 = scmp.ne.s32.totalorder %s66, %s68
      %p72 = scmp.eq.s32.totalorder %s16, 0
      %p73 = por %p71, %p72
      %p74 = scmp.ne.s32.totalorder %s66, %s68
      %p75 = scmp.eq.s32.totalorder %s21, 1
      %p76 = por %p74, %p75
      %p77 = scmp.ne.s32.totalorder %s68, %s69
      %p78 = scmp.eq.s32.totalorder %s21, 0
      %p79 = por %p77, %p78
      %p80 = scmp.ne.s32.totalorder %s68, %s69
      %p81 = scmp.eq.s32.totalorder %s22, 1
      %p82 = por %p80, %p81
      %p84 = scmp.ne.s32.totalorder %s69, %s83
      %p85 = scmp.eq.s32.totalorder %s22, 0
      %p86 = por %p84, %p85
      %s87 = ssub.s32 %s16, %s23
      %p88 = scmp.eq.s32.totalorder %s87, 0
      %s90 = sadd.s32 %s89, 1
      %s91 = scalar_select %p88, %s89, %s90
      %p94 = pneg %p88
      %p95 = scmp.eq.s32.totalorder %s16, 1
      %p96 = por %p94, %p95
      %p97 = scmp.ne.s32.totalorder %s89, %s92
      %p98 = scmp.eq.s32.totalorder %s16, 0
      %p99 = por %p97, %p98
      %p100 = scmp.ne.s32.totalorder %s89, %s92
      %p101 = scmp.eq.s32.totalorder %s21, 1
      %p102 = por %p100, %p101
      %p103 = scmp.ne.s32.totalorder %s92, %s93
      %p104 = scmp.eq.s32.totalorder %s21, 0
      %p105 = por %p103, %p104
      %p106 = scmp.ne.s32.totalorder %s92, %s93
      %p107 = scmp.eq.s32.totalorder %s22, 1
      %p108 = por %p106, %p107
      %p110 = scmp.ne.s32.totalorder %s93, %s109
      %p111 = scmp.eq.s32.totalorder %s22, 0
      %p112 = por %p110, %p111
      %s113 = ssub.s32 %s16, %s23
      %p114 = scmp.eq.s32.totalorder %s113, 0
      %s116 = sadd.s32 %s115, 1
      %s117 = scalar_select %p114, %s115, %s116
      %p120 = pneg %p114
      %p121 = scmp.eq.s32.totalorder %s16, 1
      %p122 = por %p120, %p121
      %p123 = scmp.ne.s32.totalorder %s115, %s118
      %p124 = scmp.eq.s32.totalorder %s16, 0
      %p125 = por %p123, %p124
      %p126 = scmp.ne.s32.totalorder %s115, %s118
      %p127 = scmp.eq.s32.totalorder %s21, 1
      %p128 = por %p126, %p127
      %p129 = scmp.ne.s32.totalorder %s118, %s119
      %p130 = scmp.eq.s32.totalorder %s21, 0
      %p131 = por %p129, %p130
      %p132 = scmp.ne.s32.totalorder %s118, %s119
      %p133 = scmp.eq.s32.totalorder %s22, 1
      %p134 = por %p132, %p133
      %p136 = scmp.ne.s32.totalorder %s119, %s135
      %p137 = scmp.eq.s32.totalorder %s22, 0
      %p138 = por %p136, %p137
      %s139 = ssub.s32 %s16, %s23
      %p140 = scmp.eq.s32.totalorder %s139, 0
      %s142 = sadd.s32 %s141, 1
      %s143 = scalar_select %p140, %s141, %s142
      %p146 = pneg %p140
      %p147 = scmp.eq.s32.totalorder %s16, 1
      %p148 = por %p146, %p147
      %p149 = scmp.ne.s32.totalorder %s141, %s144
      %p150 = scmp.eq.s32.totalorder %s16, 0
      %p151 = por %p149, %p150
      %p152 = scmp.ne.s32.totalorder %s141, %s144
      %p153 = scmp.eq.s32.totalorder %s21, 1
      %p154 = por %p152, %p153
      %p155 = scmp.ne.s32.totalorder %s144, %s145
      %p156 = scmp.eq.s32.totalorder %s21, 0
      %p157 = por %p155, %p156
      %p158 = scmp.ne.s32.totalorder %s144, %s145
      %p159 = scmp.eq.s32.totalorder %s22, 1
      %p160 = por %p158, %p159
      %p162 = scmp.ne.s32.totalorder %s145, %s161
      %p163 = scmp.eq.s32.totalorder %s22, 0
      %p164 = por %p162, %p163
      %p165 = scmp.le.s32.totalorder 1, %s16
      %p166 = scmp.lt.s32.totalorder %s16, 3
      %p167 = pnand %p165, %p166
      %p168 = pneg %p167
      // Predicated region
      $region9: #{tpu_custom_call.1} parent=5 // pred_check
        _
      $region10: #{tpu_custom_call.1} parent=5 // pred_check_branch
        %170 = sbr.rel (%p167) target = $region12
      $region11: #{tpu_custom_call.1} parent=5 // pred_region
        %s171 = ssub.s32 %s16, 1
        // Predicated region
        $region13: #{tpu_custom_call.1} parent=11 // pred_check
          %p172 = pneg %p37
        $region14: #{tpu_custom_call.1} parent=11 // pred_check_branch
          %174 = sbr.rel (%p172) target = $region16
        $region15: #{tpu_custom_call.1} parent=11 // pred_region
          %176 = vsyncadd [#allocation3], 0
          %s178 = sshll.u32 %s0, 4
          %s179 = int_to_ptr.hbm [resolvable:$true] %s178
          %s180 = sshll.u32 [#allocation2], 4
          %s181 = int_to_ptr.vmem [resolvable:$true] %s180
          %183 = dma.hbm_to_vmem [thread:$0]  %s179, 16, %s181, [#allocation3]
        $region16: #{tpu_custom_call.1} parent=11 // pred_fallthru
          _
        // Predicated region
        $region17: #{tpu_custom_call.1} parent=11 // pred_check
          %p184 = pneg %p58
        $region18: #{tpu_custom_call.1} parent=11 // pred_check_branch
          %186 = sbr.rel (%p184) target = $region20
        $region19: #{tpu_custom_call.1} parent=11 // pred_region
          %188 = vsyncadd [#allocation6], 0
          %s190 = sshll.u32 %s1, 4
          %s191 = int_to_ptr.hbm [resolvable:$true] %s190
          %s192 = sshll.u32 [#allocation5], 4
          %s193 = int_to_ptr.vmem [resolvable:$true] %s192
          %195 = dma.hbm_to_vmem [thread:$0]  %s191, 16, %s193, [#allocation6]
        $region20: #{tpu_custom_call.1} parent=11 // pred_fallthru
          _
        // Predicated region
        $region21: #{tpu_custom_call.1} parent=11 // pred_check
          %p196 = pneg %p79
        $region22: #{tpu_custom_call.1} parent=11 // pred_check_branch
          %198 = sbr.rel (%p196) target = $region24
        $region23: #{tpu_custom_call.1} parent=11 // pred_region
          _
        $region24: #{tpu_custom_call.1} parent=11 // pred_fallthru
          _
      $region12: #{tpu_custom_call.1} parent=5 // pred_fallthru
        _
      %p199 = scmp.lt.s32.totalorder %s16, 2
      // Predicated region
      $region25: #{tpu_custom_call.1} parent=5 // pred_check
        %p200 = pneg %p199
      $region26: #{tpu_custom_call.1} parent=5 // pred_check_branch
        %202 = sbr.rel (%p200) target = $region28
      $region27: #{tpu_custom_call.1} parent=5 // pred_region
        // Predicated region
        $region29: #{tpu_custom_call.1} parent=27 // pred_check
          %p203 = pneg %p99
        $region30: #{tpu_custom_call.1} parent=27 // pred_check_branch
          %205 = sbr.rel (%p203) target = $region32
        $region31: #{tpu_custom_call.1} parent=27 // pred_region
          %s206 = sand.u32 %s16, 1
          %s207 = scalar_lea.sflag [#allocation3], %s206
          %s208 = sand.u32 %s89, 1
          %s209 = smul.addr %s208, 8
          %s210 = scalar_lea.vmem [#allocation7], %s209
          %212 = vsyncadd %s207, 0
          %s213 = smul.addr %s16, 8
          %s214 = scalar_lea.hbm %s3, %s213
          %s216 = sshll.u32 %s214, 4
          %s217 = int_to_ptr.hbm [resolvable:$true] %s216
          %s218 = sshll.u32 %s210, 4
          %s219 = int_to_ptr.vmem [resolvable:$true] %s218
          %221 = dma.hbm_to_vmem [thread:$0]  %s217, 128, %s219, %s207
        $region32: #{tpu_custom_call.1} parent=27 // pred_fallthru
          _
        // Predicated region
        $region33: #{tpu_custom_call.1} parent=27 // pred_check
          %p222 = pneg %p125
        $region34: #{tpu_custom_call.1} parent=27 // pred_check_branch
          %224 = sbr.rel (%p222) target = $region36
        $region35: #{tpu_custom_call.1} parent=27 // pred_region
          %s225 = sand.u32 %s16, 1
          %s226 = scalar_lea.sflag [#allocation3], %s225
          %s227 = sand.u32 %s115, 1
          %s228 = smul.addr %s227, 8
          %s229 = scalar_lea.vmem [#allocation8], %s228
          %231 = vsyncadd %s226, 0
          %s232 = smul.addr %s16, 8
          %s233 = scalar_lea.hbm %s4, %s232
          %s235 = sshll.u32 %s233, 4
          %s236 = int_to_ptr.hbm [resolvable:$true] %s235
          %s237 = sshll.u32 %s229, 4
          %s238 = int_to_ptr.vmem [resolvable:$true] %s237
          %240 = dma.hbm_to_vmem [thread:$0]  %s236, 128, %s238, %s226
        $region36: #{tpu_custom_call.1} parent=27 // pred_fallthru
          _
      $region28: #{tpu_custom_call.1} parent=5 // pred_fallthru
        _
      %p241 = scmp.le.s32.totalorder 1, %s16
      %p242 = scmp.lt.s32.totalorder %s16, 3
      %p243 = pnand %p241, %p242
      %p244 = pneg %p243
      // Predicated region
      $region37: #{tpu_custom_call.1} parent=5 // pred_check
        _
      $region38: #{tpu_custom_call.1} parent=5 // pred_check_branch
        %246 = sbr.rel (%p243) target = $region40
      $region39: #{tpu_custom_call.1} parent=5 // pred_region
        %s247 = ssub.s32 %s16, 1
        // Predicated region
        $region41: #{tpu_custom_call.1} parent=39 // pred_check
          %p248 = pneg %p37
        $region42: #{tpu_custom_call.1} parent=39 // pred_check_branch
          %250 = sbr.rel (%p248) target = $region44
        $region43: #{tpu_custom_call.1} parent=39 // pred_region
          %252 = dma.done [#allocation3], 16
        $region44: #{tpu_custom_call.1} parent=39 // pred_fallthru
          _
        // Predicated region
        $region45: #{tpu_custom_call.1} parent=39 // pred_check
          %p253 = pneg %p58
        $region46: #{tpu_custom_call.1} parent=39 // pred_check_branch
          %255 = sbr.rel (%p253) target = $region48
        $region47: #{tpu_custom_call.1} parent=39 // pred_region
          %257 = dma.done [#allocation6], 16
        $region48: #{tpu_custom_call.1} parent=39 // pred_fallthru
          _
        %s258 = sand.u32 %s21, 1
        %s259 = scalar_lea.sflag [#allocation3], %s258
        %s260 = sand.u32 %s92, 1
        %s261 = smul.addr %s260, 8
        %s262 = scalar_lea.vmem [#allocation7], %s261
        // Predicated region
        $region49: #{tpu_custom_call.1} parent=39 // pred_check
          %p263 = pneg %p105
        $region50: #{tpu_custom_call.1} parent=39 // pred_check_branch
          %265 = sbr.rel (%p263) target = $region52
        $region51: #{tpu_custom_call.1} parent=39 // pred_region
          %267 = dma.done %s259, 128
        $region52: #{tpu_custom_call.1} parent=39 // pred_fallthru
          _
        %s268 = sand.u32 %s21, 1
        %s269 = scalar_lea.sflag [#allocation3], %s268
        %s270 = sand.u32 %s118, 1
        %s271 = smul.addr %s270, 8
        %s272 = scalar_lea.vmem [#allocation8], %s271
        // Predicated region
        $region53: #{tpu_custom_call.1} parent=39 // pred_check
          %p273 = pneg %p131
        $region54: #{tpu_custom_call.1} parent=39 // pred_check_branch
          %275 = sbr.rel (%p273) target = $region56
        $region55: #{tpu_custom_call.1} parent=39 // pred_region
          %277 = dma.done %s269, 128
        $region56: #{tpu_custom_call.1} parent=39 // pred_fallthru
          _
        %p278 = pneg %p37
        %p279 = pneg %p34
        %p280 = pneg %p58
        %p281 = pneg %p55
        %p282 = pneg %p79
        %p283 = pneg %p76
        %s284 = sand.u32 %s21, 1
        %s285 = scalar_lea.sflag [#allocation3], %s284
        %s286 = sand.u32 %s92, 1
        %s287 = smul.addr %s286, 8
        %s288 = scalar_lea.vmem [#allocation7], %s287
        %p289 = pneg %p105
        %p290 = pneg %p102
        %s291 = sand.u32 %s21, 1
        %s292 = scalar_lea.sflag [#allocation3], %s291
        %s293 = sand.u32 %s118, 1
        %s294 = smul.addr %s293, 8
        %s295 = scalar_lea.vmem [#allocation8], %s294
        %p296 = pneg %p131
        %p297 = pneg %p128
        %p298 = pneg %p157
        %p299 = pneg %p154
        %s300 = sand.u32 %s144, 1
        %s301 = scalar_lea.sflag [#allocation4], %s300
        %s302 = sand.u32 %s144, 1
        %s303 = smul.addr %s302, 8
        %s304 = scalar_lea.vmem [#allocation9], %s303
        %v305 = vld [vmem:[%s262] sm:$0xff]
        %v306 = vld [vmem:[%s272] sm:$0xff]
        %v307 = vld [vmem:[#allocation2] sm:$0x1]
        %v308 = vxor.u32 %v307, 2147483648
        %v309 = vmul.f32 %v308, 1.442695
        %v310 = vpow.pop %v309
        %v311 = vadd.f32 %v310, 1.0
        %v312 = vrcp.pop %v311
        %v313 = vmul.f32 %v311, %v312
        %v314 = vsub.f32 1.0, %v313
        %v315 = vmul.f32 %v312, %v314
        %v316 = vadd.f32 %v312, %v315
        %vm317 = vweird.f32 %v311
        %vm318 = vweird.f32 %v312
        %vm319 = vmor %vm317, %vm318
        %v320 = vsel %vm319, %v312, %v316
        %v321 = vand.u32 2147483647, %v311
        %vm322 = vcmp.eq.f32.partialorder %v321, 8.507059e+37
        %v323 = vand.u32 %v311, 2147483648
        %v324 = vor.u32 1.1754944e-38, %v323
        %v325 = vsel %vm322, %v324, %v320
        %v326 = vmul.f32 1.0, %v325
        %v327 = vmul.f32 %v326, 2.0
        %v329 = vperm.slane %v327, 0
        %v331 = vmul.f32 %v306, %v329
        %v332 = vadd.f32 %v305, %v331
        %vm333 = vcmask 261120
        %v334 = vsel %vm333, %v332, 0.0
        %335 = vadd.xlane.f32.xlu0 %v334
        %v336 = vpop.xlane.xlu0 %335
        %v337 = vmul.f32 %v336, 0.03125
        %v338 = vsub.f32 %v332, %v337
        %v339 = vmul.f32 %v338, %v338
        %v340 = vsel %vm333, %v339, 0.0
        %341 = vadd.xlane.f32.xlu0 %v340
        %v342 = vpop.xlane.xlu0 %341
        %v343 = vmul.f32 %v342, 0.03125
        %v344 = vadd.f32 %v343, 1e-05
        %v345 = vrsqrt.pop %v344
        %v346 = vmul.f32 %v345, %v344
        %v347 = vmul.f32 %v346, %v345
        %v348 = vmul.f32 0.5, %v347
        %v349 = vsub.f32 1.5, %v348
        %v350 = vmul.f32 %v345, %v349
        %vm351 = vweird.f32 %v344
        %vm352 = vweird.f32 %v345
        %vm353 = vmor %vm351, %vm352
        %v354 = vsel %vm353, %v345, %v350
        %v355 = vmul.f32 %v338, %v354
        %v356 = vld [vmem:[#allocation5] sm:$0x1]
        %v358 = vperm.slane %v356, 0
        %v360 = vmul.f32 %v355, %v358
        %v361 = vld [vmem:[%s2] sm:$0x1]
        %v363 = vperm.slane %v361, 0
        %v365 = vadd.f32 %v360, %v363
        %366 = vst.msk [vmem:[%s304] sm:$0xff] %vm333, %v365
        %s367 = sand.u32 %s144, 1
        %s368 = scalar_lea.sflag [#allocation4], %s367
        %s369 = sand.u32 %s144, 1
        %s370 = smul.addr %s369, 8
        %s371 = scalar_lea.vmem [#allocation9], %s370
        // Predicated region
        $region57: #{tpu_custom_call.1} parent=39 // pred_check
          %p372 = pneg %p154
        $region58: #{tpu_custom_call.1} parent=39 // pred_check_branch
          %374 = sbr.rel (%p372) target = $region60
        $region59: #{tpu_custom_call.1} parent=39 // pred_region
          %376 = vsyncadd %s368, 0
          %s377 = smul.addr %s21, 8
          %s378 = scalar_lea.hbm %s5, %s377
          %s380 = sshll.u32 %s371, 4
          %s381 = int_to_ptr.vmem [resolvable:$true] %s380
          %s382 = sshll.u32 %s378, 4
          %s383 = int_to_ptr.hbm [resolvable:$true] %s382
          %385 = dma.vmem_to_hbm [thread:$0]  %s381, 128, %s383, %s368
        $region60: #{tpu_custom_call.1} parent=39 // pred_fallthru
          _
      $region40: #{tpu_custom_call.1} parent=5 // pred_fallthru
        _
      %p386 = scmp.le.s32.totalorder 2, %s16
      // Predicated region
      $region61: #{tpu_custom_call.1} parent=5 // pred_check
        %p387 = pneg %p386
      $region62: #{tpu_custom_call.1} parent=5 // pred_check_branch
        %389 = sbr.rel (%p387) target = $region64
      $region63: #{tpu_custom_call.1} parent=5 // pred_region
        %s390 = ssub.s32 %s16, 2
        // Predicated region
        $region65: #{tpu_custom_call.1} parent=63 // pred_check
          %p391 = pneg %p160
        $region66: #{tpu_custom_call.1} parent=63 // pred_check_branch
          %393 = sbr.rel (%p391) target = $region68
        $region67: #{tpu_custom_call.1} parent=63 // pred_region
          %s394 = sand.u32 %s145, 1
          %s395 = scalar_lea.sflag [#allocation4], %s394
          %s396 = sand.u32 %s145, 1
          %s397 = smul.addr %s396, 8
          %s398 = scalar_lea.vmem [#allocation9], %s397
          %400 = dma.done %s395, 128
        $region68: #{tpu_custom_call.1} parent=63 // pred_fallthru
          _
      $region64: #{tpu_custom_call.1} parent=5 // pred_fallthru
        _
    $region6: #{tpu_custom_call.1} parent=1 // loop_footer
      %s20 = sadd.s32 1, %s16
    $region7: #{tpu_custom_call.1} parent=1 // loop_footer_branch
      %15 = sbr.rel target = $region3
    $region8: #{tpu_custom_call.1} parent=1 // loop_exit
      _
    %401 = vsyncpa [#allocation3], 1
    %s402 = scalar_lea.sflag [#allocation3], 1
    %403 = vsyncpa %s402, 1
    %404 = vsyncpa [#allocation6], 1
    %405 = vsyncpa [#allocation4], 1
    %s406 = scalar_lea.sflag [#allocation4], 1
    %407 = vsyncpa %s406, 1

</llo_original>
